<compile_context>
chip_gen: v5e
topology: v5e:2x2
jax: 0.10.0
libtpu: 0.0.40
codegen_flags: <defaults>
</compile_context>

<pallas_src>
import jax
import jax.numpy as jnp
from jax.experimental import pallas as pl
from jax.experimental.pallas import tpu as pltpu

# ----- problem sizes (small, consistent with the module) -----
B = 2              # batch
N = 16             # sequence length (divisible by WINDOW)
E = 32             # input_size / embed_size
NUM_HEADS = 4
HEAD_DIM = E // NUM_HEADS
HIDDEN = 64        # feedforward hidden size
WINDOW = 8         # sliding window size

LN_EPS = 1e-5
MASK_VALUE = -3.4028235e38          # reference-side masked_fill value
MASK_BIAS = -1e9                    # bounded in-kernel additive mask bias
SCALE = HEAD_DIM ** -0.5

# ----- derived sizes & packed-parameter-slab layout (row offsets, all x8) -----
BN = B * N                          # 32  rows of the flattened sequence slab
BHN = B * NUM_HEADS * N             # 128 rows/cols of the (batch, head)-stacked axis
HID_PAD = 128                       # FFN hidden padded to a full lane tile

# slab32: lane width E = 32
OFF_WVO = 0                         # (E, E)       rows h: wv @ wo[h*hd:(h+1)*hd, :]
OFF_W2 = OFF_WVO + E                # (HID_PAD, E) 2nd FFN weight, zero padded
OFF_BD = OFF_W2 + HID_PAD           # (BHN, E)     head block-diagonal 0/1 mask
OFF_RM = OFF_BD + BHN               # (BHN, BN)    0/1 replication matrix R
OFF_SEG = OFF_RM + BHN              # (BHN, E)     cols 0..3 head indicator, rest = 1
OFF_VEC = OFF_SEG + BHN             # (8, E)       rows: bo, b2, g1, be1, g2, be2, 0, 0
ROWS32 = OFF_VEC + 8                # 552

# slab128: lane width 128
OFF_WQKR = 0                        # (E, 4E)      [Wq*S | Wk | Wq*S@rot | Wk@rot]
OFF_CS = OFF_WQKR + E               # (BN, 4E)     [cos | cos | sin | sin]
OFF_RT = OFF_CS + BN                # (BN, BHN)    R^T
OFF_BDT = OFF_RT + BN               # (E, BHN)     head block-diag mask, transposed
OFF_SEGT = OFF_BDT + E              # (E, BHN)     rows 0..3 head indicator^T, rest 0
OFF_MB = OFF_SEGT + E               # (BN, BHN)    additive attention mask bias
OFF_W1 = OFF_MB + BN                # (E, HID_PAD) 1st FFN weight, zero padded
OFF_B1 = OFF_W1 + E                 # (8, HID_PAD) row 0 = b1 (zero padded)
ROWS128 = OFF_B1 + 8                # 232


# ----------------------------- shared math helpers -----------------------------
def _rotate_half(t):
    # NeoX-style rotation used by local_attention's rotary embedding (2-D input).
    d = t.shape[-1] // 2
    return jnp.concatenate([-t[:, d:], t[:, :d]], axis=-1)


def _gelu_exact(x):
    # nn.GELU() default (exact, erf-based)
    return 0.5 * x * (1.0 + jax.lax.erf(x * 0.7071067811865476))


def _layer_norm_ref(x, gamma, beta):
    # two-pass form, mirrors nn.LayerNorm (reference only)
    mu = jnp.mean(x, axis=-1, keepdims=True)
    var = jnp.mean((x - mu) ** 2, axis=-1, keepdims=True)
    return (x - mu) / jnp.sqrt(var + LN_EPS) * gamma + beta


def _layer_norm_fast(x, gamma, beta):
    # single-pass statistics: E[x^2] - mu^2 ; rsqrt goes to the EUP slot
    mu = jnp.mean(x, axis=-1, keepdims=True)
    ex2 = jnp.mean(x * x, axis=-1, keepdims=True)
    var = ex2 - mu * mu
    return (x - mu) * jax.lax.rsqrt(var + LN_EPS) * gamma + beta


def _rotary_tables():
    inv_freq = 1.0 / (10000.0 ** (jnp.arange(0, HEAD_DIM, 2, dtype=jnp.float32)
                                  / HEAD_DIM))
    t = jnp.arange(N, dtype=jnp.float32)
    freqs = t[:, None] * inv_freq[None, :]
    freqs = jnp.concatenate([freqs, freqs], axis=-1)        # (N, HEAD_DIM)
    return jnp.cos(freqs), jnp.sin(freqs)


def _band_mask():
    # query window w attends key windows w-1 .. w+1 (look_backward=look_forward=1)
    win = jnp.arange(N) // WINDOW
    return (jnp.abs(win[:, None] - win[None, :]) <= 1).astype(jnp.float32)


# ----------------------------------- kernel -----------------------------------
def transformer_block_kernel(x_ref, p32_ref, p128_ref, out_ref):
    x = x_ref[...]                                            # (BN, E)

    # ---- unpack the two parameter slabs (static, 8-aligned row slices) ----
    w_vo = p32_ref[OFF_WVO:OFF_WVO + E, :]
    w2_pad = p32_ref[OFF_W2:OFF_W2 + HID_PAD, :]
    bd_mask = p32_ref[OFF_BD:OFF_BD + BHN, :]
    r_mat = p32_ref[OFF_RM:OFF_RM + BHN, :]
    seg_pad = p32_ref[OFF_SEG:OFF_SEG + BHN, :]
    vecs = p32_ref[OFF_VEC:OFF_VEC + 8, :]
    bo, b2 = vecs[0:1, :], vecs[1:2, :]
    g1, be1 = vecs[2:3, :], vecs[3:4, :]
    g2, be2 = vecs[4:5, :], vecs[5:6, :]

    w_qkr = p128_ref[OFF_WQKR:OFF_WQKR + E, :]
    cs_full = p128_ref[OFF_CS:OFF_CS + BN, :]
    rt = p128_ref[OFF_RT:OFF_RT + BN, :]
    bd_t = p128_ref[OFF_BDT:OFF_BDT + E, :]
    segT = p128_ref[OFF_SEGT:OFF_SEGT + E, :]
    mask_bias = p128_ref[OFF_MB:OFF_MB + BN, :]
    w1_pad = p128_ref[OFF_W1:OFF_W1 + E, :]
    b1_pad = p128_ref[OFF_B1:OFF_B1 + 1, :]

    # ---- Q/K projection + rotate-half in ONE lane-dense matmul, then rotary ----
    qk_all = jnp.dot(x, w_qkr, preferred_element_type=jnp.float32)   # (BN, 4E)
    t = qk_all * cs_full                      # [q*cos | k*cos | rot(q)*sin | rot(k)*sin]
    qk = t[:, :2 * E] + t[:, 2 * E:]          # (BN, 2E) rotary applied, scale folded
    q = qk[:, :E]                             # (BN, E)
    k = qk[:, E:]                             # (BN, E)

    # ---- transposed, lane-dense, head-masked K replicated over (batch, head) ----
    # kT_rep[r, j] = k[pos(j), r]   via dim-0 contraction with R^T (MXU, no big vxpose)
    kT_rep = jax.lax.dot_general(k, rt, (((0,), (0,)), ((), ())),
                                 preferred_element_type=jnp.float32)  # (E, BHN)
    kT_bd = kT_rep * bd_t                                             # (E, BHN)

    # ---- fused value -> output projection stacked over (batch, head) rows ----
    x_rep = jnp.dot(r_mat, x, preferred_element_type=jnp.float32)     # (BHN, E)
    vo_stack = jnp.dot(x_rep * bd_mask, w_vo,
                       preferred_element_type=jnp.float32)            # (BHN, E)

    # ---- sliding-window attention: all (batch, head) pairs in one matmul ----
    sim = jnp.dot(q, kT_bd, preferred_element_type=jnp.float32)       # (BN, BHN)
    sim = sim + mask_bias                    # band + same-batch additive mask (-1e9)
    # global row max: constant within every head segment, so per-head softmax is
    # unchanged (every segment has unmasked entries at this weight scale).
    sim = sim - jnp.max(sim, axis=-1, keepdims=True)
    e = jnp.exp(sim)

    # per-head segment sums / broadcast via precomputed indicator matmuls
    denom = jnp.dot(e, seg_pad, preferred_element_type=jnp.float32)   # (BN, E)
    inv = pl.reciprocal(denom, approx=True)
    inv_wide = jnp.dot(inv, segT, preferred_element_type=jnp.float32)  # (BN, BHN)
    p = e * inv_wide

    attn = jnp.dot(p, vo_stack, preferred_element_type=jnp.float32) + bo

    # ---- residual + LayerNorm 1, FFN (GELU), residual + LayerNorm 2 ----
    x1 = _layer_norm_fast(x + attn, g1, be1)
    h1 = jnp.dot(x1, w1_pad, preferred_element_type=jnp.float32) + b1_pad
    h1 = _gelu_exact(h1)                                              # (BN, 128)
    ff = jnp.dot(h1, w2_pad, preferred_element_type=jnp.float32) + b2
    out_ref[...] = _layer_norm_fast(x1 + ff, g2, be2)


# ---------------------------------- wrappers ------------------------------------
_COST = pl.CostEstimate(flops=2_700_000, transcendentals=9_500,
                        bytes_accessed=198_000)


@jax.jit
def transformer_block_pallas(x, slab32, slab128):
    out2d = pl.pallas_call(
        transformer_block_kernel,
        out_shape=jax.ShapeDtypeStruct((BN, E), jnp.float32),
        in_specs=[pl.BlockSpec(memory_space=pltpu.MemorySpace.VMEM)
                  for _ in range(3)],
        out_specs=pl.BlockSpec(memory_space=pltpu.MemorySpace.VMEM),
        cost_estimate=_COST,
    )(x.reshape(BN, E), slab32, slab128)
    return out2d.reshape(B, N, E)


def pack_params(wq, wk, wv, wo, bo, w1, b1, w2, b2, g1, be1, g2, be2):
    """Pack all parameters / tables / masks into two f32 slabs (done once)."""
    f32 = jnp.float32
    eye_h = jnp.eye(NUM_HEADS, dtype=f32)
    wq_bd = jnp.kron(eye_h, wq) * SCALE          # block-diagonal, scale folded
    wk_bd = jnp.kron(eye_h, wk)

    # rotate_half as a matmul:  t @ r_blk == concat([-t[:, d:], t[:, :d]], -1)
    d = HEAD_DIM // 2
    r_blk = jnp.zeros((HEAD_DIM, HEAD_DIM), f32)
    r_blk = r_blk.at[jnp.arange(d) + d, jnp.arange(d)].set(-1.0)
    r_blk = r_blk.at[jnp.arange(d), jnp.arange(d) + d].set(1.0)
    rot_m = jnp.kron(eye_h, r_blk)

    # fused value + output projection: rows h*hd:(h+1)*hd = wv @ wo[h*hd:(h+1)*hd, :]
    w_vo = jnp.concatenate(
        [wv @ wo[h * HEAD_DIM:(h + 1) * HEAD_DIM, :] for h in range(NUM_HEADS)],
        axis=0)

    cos, sin = _rotary_tables()
    cos_f = jnp.tile(cos, (B, NUM_HEADS))        # (BN, E)
    sin_f = jnp.tile(sin, (B, NUM_HEADS))

    # (batch, head, pos)-stacked axis bookkeeping
    j = jnp.arange(BHN)
    b_j = j // (NUM_HEADS * N)
    h_j = (j % (NUM_HEADS * N)) // N
    m_j = j % N

    bd_mask = ((jnp.arange(E)[None, :] // HEAD_DIM)
               == h_j[:, None]).astype(f32)                          # (BHN, E)
    r_rep = (jnp.arange(BN)[None, :]
             == (b_j * N + m_j)[:, None]).astype(f32)                # (BHN, BN)

    seg_ind = (h_j[:, None] == jnp.arange(NUM_HEADS)[None, :]).astype(f32)
    # padded columns = 1 so every denominator column stays strictly positive
    seg_pad = jnp.concatenate([seg_ind, jnp.ones((BHN, E - NUM_HEADS), f32)], 1)
    segT_pad = jnp.concatenate([seg_ind.T,
                                jnp.zeros((E - NUM_HEADS, BHN), f32)], 0)

    vec8 = jnp.concatenate([bo, b2, g1, be1, g2, be2,
                            jnp.zeros((2, E), f32)], axis=0)
    w2_pad = jnp.concatenate([w2, jnp.zeros((HID_PAD - HIDDEN, E), f32)], axis=0)

    slab32 = jnp.concatenate([w_vo, w2_pad, bd_mask, r_rep, seg_pad, vec8], axis=0)

    # merged Q/K + rotate-half projection and [cos|cos|sin|sin] table
    w_qkr = jnp.concatenate([wq_bd, wk_bd, wq_bd @ rot_m, wk_bd @ rot_m], axis=1)
    cs_full = jnp.concatenate([cos_f, cos_f, sin_f, sin_f], axis=1)   # (BN, 4E)

    band = _band_mask()
    r = jnp.arange(BN)
    same_b = (r[:, None] // N) == b_j[None, :]
    allowed = same_b & (band[r[:, None] % N, m_j[None, :]] > 0)
    mask_bias = jnp.where(allowed, 0.0, MASK_BIAS).astype(f32)        # (BN, BHN)

    w1_pad = jnp.concatenate([w1, jnp.zeros((E, HID_PAD - HIDDEN), f32)], axis=1)
    b1_blk = jnp.concatenate(
        [jnp.concatenate([b1, jnp.zeros((1, HID_PAD - HIDDEN), f32)], axis=1),
         jnp.zeros((7, HID_PAD), f32)], axis=0)

    slab128 = jnp.concatenate([w_qkr, cs_full, r_rep.T, bd_mask.T, segT_pad,
                               mask_bias, w1_pad, b1_blk], axis=0)
    return slab32, slab128


# --------------------------- plain-JAX reference --------------------------------
def reference_forward(x, cos, sin, band, wq, wk, wv, wo, bo,
                      w1, b1, w2, b2, g1, be1, g2, be2):
    def one(xb):
        outs = []
        for h in range(NUM_HEADS):
            xh = xb[:, h * HEAD_DIM:(h + 1) * HEAD_DIM]
            q, k, v = xh @ wq, xh @ wk, xh @ wv
            q = q * cos + _rotate_half(q) * sin
            k = k * cos + _rotate_half(k) * sin
            q = q * SCALE
            sim = q @ k.T
            sim = jnp.where(band > 0, sim, MASK_VALUE)
            sim = sim - sim.max(-1, keepdims=True)
            p = jnp.exp(sim)
            p = p / p.sum(-1, keepdims=True)
            outs.append(p @ v)
        a = jnp.concatenate(outs, -1) @ wo + bo
        x1 = _layer_norm_ref(xb + a, g1, be1)
        h1 = _gelu_exact(x1 @ w1 + b1)
        return _layer_norm_ref(x1 + h1 @ w2 + b2, g2, be2)
    return jax.vmap(one)(x)


# ------------------------------------ main --------------------------------------
if __name__ == "__main__":
    key = jax.random.PRNGKey(0)
    ks = jax.random.split(key, 12)

    def rnd(k, shape, s=0.05):
        return jax.random.normal(k, shape, jnp.float32) * s

    # input
    x = jax.random.normal(ks[0], (B, N, E), jnp.float32)

    # SlidingAttention params (per-head shared projections, bias-free) — stored
    # already transposed to (in, out).
    wq = rnd(ks[1], (HEAD_DIM, HEAD_DIM))
    wk = rnd(ks[2], (HEAD_DIM, HEAD_DIM))
    wv = rnd(ks[3], (HEAD_DIM, HEAD_DIM))
    wo = rnd(ks[4], (E, E))
    bo = rnd(ks[5], (1, E))

    # feedforward params
    w1 = rnd(ks[6], (E, HIDDEN))
    b1 = rnd(ks[7], (1, HIDDEN))
    w2 = rnd(ks[8], (HIDDEN, E))
    b2 = rnd(ks[9], (1, E))

    # LayerNorm params
    g1, be1 = jnp.ones((1, E), jnp.float32), jnp.zeros((1, E), jnp.float32)
    g2, be2 = jnp.ones((1, E), jnp.float32), jnp.zeros((1, E), jnp.float32)

    params = (wq, wk, wv, wo, bo, w1, b1, w2, b2, g1, be1, g2, be2)

    # pack everything (weights, rotary tables, masks) into two slabs — once.
    slab32, slab128 = pack_params(*params)
    assert slab32.shape == (ROWS32, E)
    assert slab128.shape == (ROWS128, HID_PAD)

    out = transformer_block_pallas(x, slab32, slab128)
    out = jax.block_until_ready(out)

    cos, sin = _rotary_tables()
    band = _band_mask()
    ref = reference_forward(x, cos, sin, band, *params)

    assert out.shape == (B, N, E)
    assert jnp.allclose(out, ref, atol=2e-3, rtol=2e-3), (
        float(jnp.max(jnp.abs(out - ref))))

    print("KERNEL_OK")
</pallas_src>

<mosaic_0001>
module attributes {stable_mosaic.version = 11 : i64} {
  func.func @transformer_block_kernel(%arg0: memref<32x32xf32, #tpu.memory_space<vmem>>, %arg1: memref<552x32xf32, #tpu.memory_space<vmem>>, %arg2: memref<232x128xf32, #tpu.memory_space<vmem>>, %arg3: memref<32x32xf32, #tpu.memory_space<vmem>>) attributes {dimension_semantics = [], scalar_prefetch = 0 : i64, scratch_operands = 0 : i64, tpu.core_type = #tpu.core_type<tc>} {
    %c0 = arith.constant 0 : index
    %c0_0 = arith.constant 0 : index
    %0 = vector.load %arg0[%c0, %c0_0] : memref<32x32xf32, #tpu.memory_space<vmem>>, vector<32x32xf32>
    %c0_1 = arith.constant 0 : index
    %c0_2 = arith.constant 0 : index
    %1 = vector.load %arg1[%c0_1, %c0_2] : memref<552x32xf32, #tpu.memory_space<vmem>>, vector<32x32xf32>
    %c32 = arith.constant 32 : index
    %c0_3 = arith.constant 0 : index
    %2 = vector.load %arg1[%c32, %c0_3] : memref<552x32xf32, #tpu.memory_space<vmem>>, vector<128x32xf32>
    %c160 = arith.constant 160 : index
    %c0_4 = arith.constant 0 : index
    %3 = vector.load %arg1[%c160, %c0_4] : memref<552x32xf32, #tpu.memory_space<vmem>>, vector<128x32xf32>
    %c288 = arith.constant 288 : index
    %c0_5 = arith.constant 0 : index
    %4 = vector.load %arg1[%c288, %c0_5] : memref<552x32xf32, #tpu.memory_space<vmem>>, vector<128x32xf32>
    %c416 = arith.constant 416 : index
    %c0_6 = arith.constant 0 : index
    %5 = vector.load %arg1[%c416, %c0_6] : memref<552x32xf32, #tpu.memory_space<vmem>>, vector<128x32xf32>
    %c544 = arith.constant 544 : index
    %c0_7 = arith.constant 0 : index
    %6 = vector.load %arg1[%c544, %c0_7] : memref<552x32xf32, #tpu.memory_space<vmem>>, vector<8x32xf32>
    %7 = vector.extract_strided_slice %6 {offsets = [0, 0], sizes = [1, 32], strides = [1, 1]} : vector<8x32xf32> to vector<1x32xf32>
    %8 = vector.extract_strided_slice %6 {offsets = [1, 0], sizes = [1, 32], strides = [1, 1]} : vector<8x32xf32> to vector<1x32xf32>
    %9 = vector.extract_strided_slice %6 {offsets = [2, 0], sizes = [1, 32], strides = [1, 1]} : vector<8x32xf32> to vector<1x32xf32>
    %10 = vector.extract_strided_slice %6 {offsets = [3, 0], sizes = [1, 32], strides = [1, 1]} : vector<8x32xf32> to vector<1x32xf32>
    %11 = vector.extract_strided_slice %6 {offsets = [4, 0], sizes = [1, 32], strides = [1, 1]} : vector<8x32xf32> to vector<1x32xf32>
    %12 = vector.extract_strided_slice %6 {offsets = [5, 0], sizes = [1, 32], strides = [1, 1]} : vector<8x32xf32> to vector<1x32xf32>
    %c0_8 = arith.constant 0 : index
    %c0_9 = arith.constant 0 : index
    %13 = vector.load %arg2[%c0_8, %c0_9] : memref<232x128xf32, #tpu.memory_space<vmem>>, vector<32x128xf32>
    %c32_10 = arith.constant 32 : index
    %c0_11 = arith.constant 0 : index
    %14 = vector.load %arg2[%c32_10, %c0_11] : memref<232x128xf32, #tpu.memory_space<vmem>>, vector<32x128xf32>
    %c64 = arith.constant 64 : index
    %c0_12 = arith.constant 0 : index
    %15 = vector.load %arg2[%c64, %c0_12] : memref<232x128xf32, #tpu.memory_space<vmem>>, vector<32x128xf32>
    %c96 = arith.constant 96 : index
    %c0_13 = arith.constant 0 : index
    %16 = vector.load %arg2[%c96, %c0_13] : memref<232x128xf32, #tpu.memory_space<vmem>>, vector<32x128xf32>
    %c128 = arith.constant 128 : index
    %c0_14 = arith.constant 0 : index
    %17 = vector.load %arg2[%c128, %c0_14] : memref<232x128xf32, #tpu.memory_space<vmem>>, vector<32x128xf32>
    %c160_15 = arith.constant 160 : index
    %c0_16 = arith.constant 0 : index
    %18 = vector.load %arg2[%c160_15, %c0_16] : memref<232x128xf32, #tpu.memory_space<vmem>>, vector<32x128xf32>
    %c192 = arith.constant 192 : index
    %c0_17 = arith.constant 0 : index
    %19 = vector.load %arg2[%c192, %c0_17] : memref<232x128xf32, #tpu.memory_space<vmem>>, vector<32x128xf32>
    %c224 = arith.constant 224 : index
    %c0_18 = arith.constant 0 : index
    %20 = vector.load %arg2[%c224, %c0_18] : memref<232x128xf32, #tpu.memory_space<vmem>>, vector<1x128xf32>
    %cst = arith.constant dense<0.000000e+00> : vector<32x128xf32>
    %21 = tpu.matmul %0, %13, %cst {dimension_numbers = #tpu.dot_dimension_numbers<[1], [0], [0], [1], [0, 0, 1, 1], [], []>} : vector<32x32xf32>, vector<32x128xf32>, vector<32x128xf32> -> vector<32x128xf32>
    %22 = arith.mulf %21, %14 : vector<32x128xf32>
    %23 = vector.extract_strided_slice %22 {offsets = [0, 0], sizes = [32, 64], strides = [1, 1]} : vector<32x128xf32> to vector<32x64xf32>
    %24 = vector.extract_strided_slice %22 {offsets = [0, 64], sizes = [32, 64], strides = [1, 1]} : vector<32x128xf32> to vector<32x64xf32>
    %25 = arith.addf %23, %24 : vector<32x64xf32>
    %26 = vector.extract_strided_slice %25 {offsets = [0, 0], sizes = [32, 32], strides = [1, 1]} : vector<32x64xf32> to vector<32x32xf32>
    %27 = vector.extract_strided_slice %25 {offsets = [0, 32], sizes = [32, 32], strides = [1, 1]} : vector<32x64xf32> to vector<32x32xf32>
    %cst_19 = arith.constant dense<0.000000e+00> : vector<32x128xf32>
    %28 = tpu.matmul %27, %15, %cst_19 {dimension_numbers = #tpu.dot_dimension_numbers<[0], [0], [1], [1], [0, 1, 1, 1], [], []>} : vector<32x32xf32>, vector<32x128xf32>, vector<32x128xf32> -> vector<32x128xf32>
    %29 = arith.mulf %28, %16 : vector<32x128xf32>
    %cst_20 = arith.constant dense<0.000000e+00> : vector<128x32xf32>
    %30 = tpu.matmul %4, %0, %cst_20 {dimension_numbers = #tpu.dot_dimension_numbers<[1], [0], [0], [1], [0, 0, 1, 1], [], []>} : vector<128x32xf32>, vector<32x32xf32>, vector<128x32xf32> -> vector<128x32xf32>
    %31 = arith.mulf %30, %3 : vector<128x32xf32>
    %cst_21 = arith.constant dense<0.000000e+00> : vector<128x32xf32>
    %32 = tpu.matmul %31, %1, %cst_21 {dimension_numbers = #tpu.dot_dimension_numbers<[1], [0], [0], [1], [0, 0, 1, 1], [], []>} : vector<128x32xf32>, vector<32x32xf32>, vector<128x32xf32> -> vector<128x32xf32>
    %cst_22 = arith.constant dense<0.000000e+00> : vector<32x128xf32>
    %33 = tpu.matmul %26, %29, %cst_22 {dimension_numbers = #tpu.dot_dimension_numbers<[1], [0], [0], [1], [0, 0, 1, 1], [], []>} : vector<32x32xf32>, vector<32x128xf32>, vector<32x128xf32> -> vector<32x128xf32>
    %34 = arith.addf %33, %18 : vector<32x128xf32>
    %cst_23 = arith.constant dense<0xFF800000> : vector<32xf32>
    %35 = vector.multi_reduction <maximumf>, %34, %cst_23 [1] : vector<32x128xf32> to vector<32xf32>
    %36 = vector.shape_cast %35 : vector<32xf32> to vector<32x1xf32>
    %37 = vector.broadcast %36 : vector<32x1xf32> to vector<32x128xf32>
    %38 = arith.subf %34, %37 : vector<32x128xf32>
    %39 = math.exp %38 : vector<32x128xf32>
    %cst_24 = arith.constant dense<0.000000e+00> : vector<32x32xf32>
    %40 = tpu.matmul %39, %5, %cst_24 {dimension_numbers = #tpu.dot_dimension_numbers<[1], [0], [0], [1], [0, 0, 1, 1], [], []>} : vector<32x128xf32>, vector<128x32xf32>, vector<32x32xf32> -> vector<32x32xf32>
    %41 = tpu.reciprocal %40 {approx = true} : vector<32x32xf32> -> vector<32x32xf32>
    %cst_25 = arith.constant dense<0.000000e+00> : vector<32x128xf32>
    %42 = tpu.matmul %41, %17, %cst_25 {dimension_numbers = #tpu.dot_dimension_numbers<[1], [0], [0], [1], [0, 0, 1, 1], [], []>} : vector<32x32xf32>, vector<32x128xf32>, vector<32x128xf32> -> vector<32x128xf32>
    %43 = arith.mulf %39, %42 : vector<32x128xf32>
    %cst_26 = arith.constant dense<0.000000e+00> : vector<32x32xf32>
    %44 = tpu.matmul %43, %32, %cst_26 {dimension_numbers = #tpu.dot_dimension_numbers<[1], [0], [0], [1], [0, 0, 1, 1], [], []>} : vector<32x128xf32>, vector<128x32xf32>, vector<32x32xf32> -> vector<32x32xf32>
    %45 = vector.broadcast %7 : vector<1x32xf32> to vector<32x32xf32>
    %46 = arith.addf %44, %45 : vector<32x32xf32>
    %47 = arith.addf %0, %46 : vector<32x32xf32>
    %cst_27 = arith.constant dense<0.000000e+00> : vector<32xf32>
    %48 = vector.multi_reduction <add>, %47, %cst_27 [1] : vector<32x32xf32> to vector<32xf32>
    %49 = vector.shape_cast %48 : vector<32xf32> to vector<32x1xf32>
    %cst_28 = arith.constant 3.200000e+01 : f32
    %50 = vector.broadcast %cst_28 : f32 to vector<32x1xf32>
    %51 = arith.divf %49, %50 : vector<32x1xf32>
    %52 = arith.mulf %47, %47 : vector<32x32xf32>
    %cst_29 = arith.constant dense<0.000000e+00> : vector<32xf32>
    %53 = vector.multi_reduction <add>, %52, %cst_29 [1] : vector<32x32xf32> to vector<32xf32>
    %54 = vector.shape_cast %53 : vector<32xf32> to vector<32x1xf32>
    %cst_30 = arith.constant 3.200000e+01 : f32
    %55 = vector.broadcast %cst_30 : f32 to vector<32x1xf32>
    %56 = arith.divf %54, %55 : vector<32x1xf32>
    %57 = arith.mulf %51, %51 : vector<32x1xf32>
    %58 = arith.subf %56, %57 : vector<32x1xf32>
    %59 = vector.broadcast %51 : vector<32x1xf32> to vector<32x32xf32>
    %60 = arith.subf %47, %59 : vector<32x32xf32>
    %cst_31 = arith.constant 9.99999974E-6 : f32
    %61 = vector.broadcast %cst_31 : f32 to vector<32x1xf32>
    %62 = arith.addf %58, %61 : vector<32x1xf32>
    %63 = math.rsqrt %62 : vector<32x1xf32>
    %64 = vector.broadcast %63 : vector<32x1xf32> to vector<32x32xf32>
    %65 = arith.mulf %60, %64 : vector<32x32xf32>
    %66 = vector.broadcast %9 : vector<1x32xf32> to vector<32x32xf32>
    %67 = arith.mulf %65, %66 : vector<32x32xf32>
    %68 = vector.broadcast %10 : vector<1x32xf32> to vector<32x32xf32>
    %69 = arith.addf %67, %68 : vector<32x32xf32>
    %cst_32 = arith.constant dense<0.000000e+00> : vector<32x128xf32>
    %70 = tpu.matmul %69, %19, %cst_32 {dimension_numbers = #tpu.dot_dimension_numbers<[1], [0], [0], [1], [0, 0, 1, 1], [], []>} : vector<32x32xf32>, vector<32x128xf32>, vector<32x128xf32> -> vector<32x128xf32>
    %71 = vector.broadcast %20 : vector<1x128xf32> to vector<32x128xf32>
    %72 = arith.addf %70, %71 : vector<32x128xf32>
    %cst_33 = arith.constant 5.000000e-01 : f32
    %73 = vector.broadcast %cst_33 : f32 to vector<32x128xf32>
    %74 = arith.mulf %73, %72 : vector<32x128xf32>
    %cst_34 = arith.constant 0.707106769 : f32
    %75 = vector.broadcast %cst_34 : f32 to vector<32x128xf32>
    %76 = arith.mulf %72, %75 : vector<32x128xf32>
    %77 = math.erf %76 : vector<32x128xf32>
    %cst_35 = arith.constant 1.000000e+00 : f32
    %78 = vector.broadcast %cst_35 : f32 to vector<32x128xf32>
    %79 = arith.addf %78, %77 : vector<32x128xf32>
    %80 = arith.mulf %74, %79 : vector<32x128xf32>
    %cst_36 = arith.constant dense<0.000000e+00> : vector<32x32xf32>
    %81 = tpu.matmul %80, %2, %cst_36 {dimension_numbers = #tpu.dot_dimension_numbers<[1], [0], [0], [1], [0, 0, 1, 1], [], []>} : vector<32x128xf32>, vector<128x32xf32>, vector<32x32xf32> -> vector<32x32xf32>
    %82 = vector.broadcast %8 : vector<1x32xf32> to vector<32x32xf32>
    %83 = arith.addf %81, %82 : vector<32x32xf32>
    %84 = arith.addf %69, %83 : vector<32x32xf32>
    %cst_37 = arith.constant dense<0.000000e+00> : vector<32xf32>
    %85 = vector.multi_reduction <add>, %84, %cst_37 [1] : vector<32x32xf32> to vector<32xf32>
    %86 = vector.shape_cast %85 : vector<32xf32> to vector<32x1xf32>
    %cst_38 = arith.constant 3.200000e+01 : f32
    %87 = vector.broadcast %cst_38 : f32 to vector<32x1xf32>
    %88 = arith.divf %86, %87 : vector<32x1xf32>
    %89 = arith.mulf %84, %84 : vector<32x32xf32>
    %cst_39 = arith.constant dense<0.000000e+00> : vector<32xf32>
    %90 = vector.multi_reduction <add>, %89, %cst_39 [1] : vector<32x32xf32> to vector<32xf32>
    %91 = vector.shape_cast %90 : vector<32xf32> to vector<32x1xf32>
    %cst_40 = arith.constant 3.200000e+01 : f32
    %92 = vector.broadcast %cst_40 : f32 to vector<32x1xf32>
    %93 = arith.divf %91, %92 : vector<32x1xf32>
    %94 = arith.mulf %88, %88 : vector<32x1xf32>
    %95 = arith.subf %93, %94 : vector<32x1xf32>
    %96 = vector.broadcast %88 : vector<32x1xf32> to vector<32x32xf32>
    %97 = arith.subf %84, %96 : vector<32x32xf32>
    %cst_41 = arith.constant 9.99999974E-6 : f32
    %98 = vector.broadcast %cst_41 : f32 to vector<32x1xf32>
    %99 = arith.addf %95, %98 : vector<32x1xf32>
    %100 = math.rsqrt %99 : vector<32x1xf32>
    %101 = vector.broadcast %100 : vector<32x1xf32> to vector<32x32xf32>
    %102 = arith.mulf %97, %101 : vector<32x32xf32>
    %103 = vector.broadcast %11 : vector<1x32xf32> to vector<32x32xf32>
    %104 = arith.mulf %102, %103 : vector<32x32xf32>
    %105 = vector.broadcast %12 : vector<1x32xf32> to vector<32x32xf32>
    %106 = arith.addf %104, %105 : vector<32x32xf32>
    %c0_42 = arith.constant 0 : index
    %c0_43 = arith.constant 0 : index
    %107 = vector.load %arg3[%c0_42, %c0_43] : memref<32x32xf32, #tpu.memory_space<vmem>>, vector<32x32xf32>
    tpu.vector_store %arg3[%c0_42, %c0_43], %106 {strides = array<i32>} : memref<32x32xf32, #tpu.memory_space<vmem>>, vector<32x32xf32>,
    return
  }
}

</mosaic_0001>

<llo_original>
// kernel: transformer_block_pallas.1
$region0: #{transformer_block_pallas.1}
  #allocation0 [shape = 'u32[]', space=smem, size = 0x4, offset = 0x4, fixed_abs, tag = 'smem constant byte address 0x4 - core index']
  #allocation1 [shape = 'u32[72,128]{1,0:T(1,128)}', space=vmem, size = 0x9000, scoped, tag = 'internal scratch']
  %s0 = inlined_call_operand.vmem [shape: f32[32,32], index: 0, kind: input, shape index: {}]
  %s1 = inlined_call_operand.vmem [shape: f32[552,32], index: 1, kind: input, shape index: {}]
  %s2 = inlined_call_operand.vmem [shape: f32[232,128], index: 2, kind: input, shape index: {}]
  %s3 = inlined_call_operand.hbm [shape: f32[32,32], index: 3, kind: output, shape index: {}]
  %s4 = sld [smem:[#allocation0]]
  $region22: #{transformer_block_pallas.1} parent=0
    _
  %s6 = ssub.s32 1, %s4
  %s7 = scalar_select 0, %s6, %s4
  $region1: #{transformer_block_pallas.1} parent=0
    #allocation2 [shape = 'u8[16384]{0}', space=vmem, size = 0x4000, scoped, tag = 'output window, operand 0, single buffered']
    #allocation3 [shape = 's32[1]{0}', space=sflag, size = 0x4, scoped, tag = 'scoped memory for transformer_block_pallas.1']
    %8 = vsyncpa [#allocation3], 0
    // Predicated region
    $region2: #{transformer_block_pallas.1} parent=1 // pred_check
      _
    $region3: #{transformer_block_pallas.1} parent=1 // pred_check_branch
      %10 = sbr.rel (0) target = $region5
    $region4: #{transformer_block_pallas.1} parent=1 // pred_region
      _
    $region5: #{transformer_block_pallas.1} parent=1 // pred_fallthru
      _
    // Predicated region
    $region6: #{transformer_block_pallas.1} parent=1 // pred_check
      _
    $region7: #{transformer_block_pallas.1} parent=1 // pred_check_branch
      %12 = sbr.rel (0) target = $region9
    $region8: #{transformer_block_pallas.1} parent=1 // pred_region
      _
    $region9: #{transformer_block_pallas.1} parent=1 // pred_fallthru
      _
    // Predicated region
    $region10: #{transformer_block_pallas.1} parent=1 // pred_check
      _
    $region11: #{transformer_block_pallas.1} parent=1 // pred_check_branch
      %14 = sbr.rel (0) target = $region13
    $region12: #{transformer_block_pallas.1} parent=1 // pred_region
      _
    $region13: #{transformer_block_pallas.1} parent=1 // pred_fallthru
      _
    %v15 = vld [vmem:[%s0] sm:$0xff]
    %v16 = vld [vmem:[%s0 + $0x8] sm:$0xff]
    %v17 = vld [vmem:[%s0 + $0x10] sm:$0xff]
    %v18 = vld [vmem:[%s0 + $0x18] sm:$0xff]
    %v19 = vld [vmem:[%s1] sm:$0xff]
    %v20 = vld [vmem:[%s1 + $0x8] sm:$0xff]
    %v21 = vld [vmem:[%s1 + $0x10] sm:$0xff]
    %v22 = vld [vmem:[%s1 + $0x18] sm:$0xff]
    %v23 = vld [vmem:[%s1 + $0x20] sm:$0xff]
    %v24 = vld [vmem:[%s1 + $0x28] sm:$0xff]
    %v25 = vld [vmem:[%s1 + $0x30] sm:$0xff]
    %v26 = vld [vmem:[%s1 + $0x38] sm:$0xff]
    %v27 = vld [vmem:[%s1 + $0x40] sm:$0xff]
    %v28 = vld [vmem:[%s1 + $0x48] sm:$0xff]
    %v29 = vld [vmem:[%s1 + $0x50] sm:$0xff]
    %v30 = vld [vmem:[%s1 + $0x58] sm:$0xff]
    %v31 = vld [vmem:[%s1 + $0x60] sm:$0xff]
    %v32 = vld [vmem:[%s1 + $0x68] sm:$0xff]
    %v33 = vld [vmem:[%s1 + $0x70] sm:$0xff]
    %v34 = vld [vmem:[%s1 + $0x78] sm:$0xff]
    %v35 = vld [vmem:[%s1 + $0x80] sm:$0xff]
    %v36 = vld [vmem:[%s1 + $0x88] sm:$0xff]
    %v37 = vld [vmem:[%s1 + $0x90] sm:$0xff]
    %v38 = vld [vmem:[%s1 + $0x98] sm:$0xff]
    %v39 = vld [vmem:[%s1 + $0xa0] sm:$0xff]
    %v40 = vld [vmem:[%s1 + $0xa8] sm:$0xff]
    %v41 = vld [vmem:[%s1 + $0xb0] sm:$0xff]
    %v42 = vld [vmem:[%s1 + $0xb8] sm:$0xff]
    %v43 = vld [vmem:[%s1 + $0xc0] sm:$0xff]
    %v44 = vld [vmem:[%s1 + $0xc8] sm:$0xff]
    %v45 = vld [vmem:[%s1 + $0xd0] sm:$0xff]
    %v46 = vld [vmem:[%s1 + $0xd8] sm:$0xff]
    %v47 = vld [vmem:[%s1 + $0xe0] sm:$0xff]
    %v48 = vld [vmem:[%s1 + $0xe8] sm:$0xff]
    %v49 = vld [vmem:[%s1 + $0xf0] sm:$0xff]
    %v50 = vld [vmem:[%s1 + $0xf8] sm:$0xff]
    %v51 = vld [vmem:[%s1 + $0x100] sm:$0xff]
    %v52 = vld [vmem:[%s1 + $0x108] sm:$0xff]
    %v53 = vld [vmem:[%s1 + $0x110] sm:$0xff]
    %v54 = vld [vmem:[%s1 + $0x118] sm:$0xff]
    %v55 = vld [vmem:[%s1 + $0x120] sm:$0xff]
    %v56 = vld [vmem:[%s1 + $0x128] sm:$0xff]
    %v57 = vld [vmem:[%s1 + $0x130] sm:$0xff]
    %v58 = vld [vmem:[%s1 + $0x138] sm:$0xff]
    %v59 = vld [vmem:[%s1 + $0x140] sm:$0xff]
    %v60 = vld [vmem:[%s1 + $0x148] sm:$0xff]
    %v61 = vld [vmem:[%s1 + $0x150] sm:$0xff]
    %v62 = vld [vmem:[%s1 + $0x158] sm:$0xff]
    %v63 = vld [vmem:[%s1 + $0x160] sm:$0xff]
    %v64 = vld [vmem:[%s1 + $0x168] sm:$0xff]
    %v65 = vld [vmem:[%s1 + $0x170] sm:$0xff]
    %v66 = vld [vmem:[%s1 + $0x178] sm:$0xff]
    %v67 = vld [vmem:[%s1 + $0x180] sm:$0xff]
    %v68 = vld [vmem:[%s1 + $0x188] sm:$0xff]
    %v69 = vld [vmem:[%s1 + $0x190] sm:$0xff]
    %v70 = vld [vmem:[%s1 + $0x198] sm:$0xff]
    %v71 = vld [vmem:[%s1 + $0x1a0] sm:$0xff]
    %v72 = vld [vmem:[%s1 + $0x1a8] sm:$0xff]
    %v73 = vld [vmem:[%s1 + $0x1b0] sm:$0xff]
    %v74 = vld [vmem:[%s1 + $0x1b8] sm:$0xff]
    %v75 = vld [vmem:[%s1 + $0x1c0] sm:$0xff]
    %v76 = vld [vmem:[%s1 + $0x1c8] sm:$0xff]
    %v77 = vld [vmem:[%s1 + $0x1d0] sm:$0xff]
    %v78 = vld [vmem:[%s1 + $0x1d8] sm:$0xff]
    %v79 = vld [vmem:[%s1 + $0x1e0] sm:$0xff]
    %v80 = vld [vmem:[%s1 + $0x1e8] sm:$0xff]
    %v81 = vld [vmem:[%s1 + $0x1f0] sm:$0xff]
    %v82 = vld [vmem:[%s1 + $0x1f8] sm:$0xff]
    %v83 = vld [vmem:[%s1 + $0x200] sm:$0xff]
    %v84 = vld [vmem:[%s1 + $0x208] sm:$0xff]
    %v85 = vld [vmem:[%s1 + $0x210] sm:$0xff]
    %v86 = vld [vmem:[%s1 + $0x218] sm:$0xff]
    %v87 = vld [vmem:[%s1 + $0x220] sm:$0xff]
    %v88 = vld [vmem:[%s2] sm:$0xff]
    %v89 = vld [vmem:[%s2 + $0x8] sm:$0xff]
    %v90 = vld [vmem:[%s2 + $0x10] sm:$0xff]
    %v91 = vld [vmem:[%s2 + $0x18] sm:$0xff]
    %v92 = vld [vmem:[%s2 + $0x20] sm:$0xff]
    %v93 = vld [vmem:[%s2 + $0x28] sm:$0xff]
    %v94 = vld [vmem:[%s2 + $0x30] sm:$0xff]
    %v95 = vld [vmem:[%s2 + $0x38] sm:$0xff]
    %v96 = vld [vmem:[%s2 + $0x40] sm:$0xff]
    %v97 = vld [vmem:[%s2 + $0x48] sm:$0xff]
    %v98 = vld [vmem:[%s2 + $0x50] sm:$0xff]
    %v99 = vld [vmem:[%s2 + $0x58] sm:$0xff]
    %v100 = vld [vmem:[%s2 + $0x60] sm:$0xff]
    %v101 = vld [vmem:[%s2 + $0x68] sm:$0xff]
    %v102 = vld [vmem:[%s2 + $0x70] sm:$0xff]
    %v103 = vld [vmem:[%s2 + $0x78] sm:$0xff]
    %v104 = vld [vmem:[%s2 + $0x80] sm:$0xff]
    %v105 = vld [vmem:[%s2 + $0x88] sm:$0xff]
    %v106 = vld [vmem:[%s2 + $0x90] sm:$0xff]
    %v107 = vld [vmem:[%s2 + $0x98] sm:$0xff]
    %v108 = vld [vmem:[%s2 + $0xa0] sm:$0xff]
    %v109 = vld [vmem:[%s2 + $0xa8] sm:$0xff]
    %v110 = vld [vmem:[%s2 + $0xb0] sm:$0xff]
    %v111 = vld [vmem:[%s2 + $0xb8] sm:$0xff]
    %v112 = vld [vmem:[%s2 + $0xc0] sm:$0xff]
    %v113 = vld [vmem:[%s2 + $0xc8] sm:$0xff]
    %v114 = vld [vmem:[%s2 + $0xd0] sm:$0xff]
    %v115 = vld [vmem:[%s2 + $0xd8] sm:$0xff]
    %v116 = vld [vmem:[%s2 + $0xe0] sm:$0x1]
    %vm117 = vcmask 261120
    %v119 = vsel %vm117, %v15, 0
    %v122 = vsel %vm117, %v16, 0
    %v125 = vsel %vm117, %v17, 0
    %v128 = vsel %vm117, %v18, 0
    %130 = vmatpush.msra.mxu0 0.0
    %131 = vmatpush.msra.mxu0 0.0
    %132 = vmatpush.msra.mxu0 0.0
    %133 = vmatpush.msra.mxu0 0.0
    %134 = vmatpush.msra.mxu0 0.0
    %135 = vmatpush.msra.mxu0 0.0
    %136 = vmatpush.msra.mxu0 0.0
    %137 = vmatpush.msra.mxu0 0.0
    %138 = vmatpush.msra.mxu0 0.0
    %139 = vmatpush.msra.mxu0 0.0
    %140 = vmatpush.msra.mxu0 0.0
    %141 = vmatpush.msra.mxu0 0.0
    %142 = vmatpush.msra.mxu0 %v91
    %143 = vmatpush.msra.mxu0 %v90
    %144 = vmatpush.msra.mxu0 %v89
    %145 = vmatpush.msra.mxu0 %v88
    %146 = vmatmul.f32.gmra.mxu0 %v119
    %v147 = vpop.f32.mrf.mxu0
    %v148 = vadd.f32 0.0, %v147
    %149 = vmatmul.f32.gmra.mxu0 %v122
    %v150 = vpop.f32.mrf.mxu0
    %v151 = vadd.f32 0.0, %v150
    %152 = vmatmul.f32.gmra.mxu0 %v125
    %v153 = vpop.f32.mrf.mxu0
    %v154 = vadd.f32 0.0, %v153
    %155 = vmatmul.f32.gmra.mxu0 %v128
    %v156 = vpop.f32.mrf.mxu0
    %v157 = vadd.f32 0.0, %v156
    %158 = vdwg.mxu0
    %v159 = vmul.f32 %v148, %v92
    %v160 = vmul.f32 %v151, %v93
    %v161 = vmul.f32 %v154, %v94
    %v162 = vmul.f32 %v157, %v95
    %167 = vrot.lane.b32.xlu0 %v159, 64
    %v168 = vpop.permute.xlu0 %167
    %169 = vrot.lane.b32.xlu0 %v160, 64
    %v170 = vpop.permute.xlu0 %169
    %171 = vrot.lane.b32.xlu0 %v161, 64
    %v172 = vpop.permute.xlu0 %171
    %173 = vrot.lane.b32.xlu0 %v162, 64
    %v174 = vpop.permute.xlu0 %173
    %v179 = vadd.f32 %v159, %v168
    %v180 = vadd.f32 %v160, %v170
    %v181 = vadd.f32 %v161, %v172
    %v182 = vadd.f32 %v162, %v174
    %187 = vrot.lane.b32.xlu0 %v179, 96
    %v188 = vpop.permute.xlu0 %187
    %189 = vrot.lane.b32.xlu0 %v180, 96
    %v190 = vpop.permute.xlu0 %189
    %191 = vrot.lane.b32.xlu0 %v181, 96
    %v192 = vpop.permute.xlu0 %191
    %193 = vrot.lane.b32.xlu0 %v182, 96
    %v194 = vpop.permute.xlu0 %193
    %199 = vxpose.xlu0.b32.start [1/16] %v188, 128
    %200 = vxpose.xlu0.b32.cont [2/16] %v190, 128
    %201 = vxpose.xlu0.b32.cont [3/16] %v192, 128
    %202 = vxpose.xlu0.b32.cont [4/16] %v194, 128
    %203 = vxpose.xlu0.b32.cont [5/16] 0.0, 128
    %204 = vxpose.xlu0.b32.cont [6/16] 0.0, 128
    %205 = vxpose.xlu0.b32.cont [7/16] 0.0, 128
    %206 = vxpose.xlu0.b32.cont [8/16] 0.0, 128
    %207 = vxpose.xlu0.b32.cont [9/16] 0.0, 128
    %208 = vxpose.xlu0.b32.cont [10/16] 0.0, 128
    %209 = vxpose.xlu0.b32.cont [11/16] 0.0, 128
    %210 = vxpose.xlu0.b32.cont [12/16] 0.0, 128
    %211 = vxpose.xlu0.b32.cont [13/16] 0.0, 128
    %212 = vxpose.xlu0.b32.cont [14/16] 0.0, 128
    %213 = vxpose.xlu0.b32.cont [15/16] 0.0, 128
    %214 = vxpose.xlu0.b32.end [16/16] 0.0, 128
    %v215 = vpop.trf.xlu0
    %v216 = vpop.trf.xlu0
    %v217 = vpop.trf.xlu0
    %v218 = vpop.trf.xlu0
    %v219 = vpop.trf.xlu0
    %v220 = vpop.trf.xlu0
    %v221 = vpop.trf.xlu0
    %v222 = vpop.trf.xlu0
    %v223 = vpop.trf.xlu0
    %v224 = vpop.trf.xlu0
    %v225 = vpop.trf.xlu0
    %v226 = vpop.trf.xlu0
    %v227 = vpop.trf.xlu0
    %v228 = vpop.trf.xlu0
    %v229 = vpop.trf.xlu0
    %v230 = vpop.trf.xlu0
    %v232 = vsel %vm117, %v215, 0
    %v235 = vsel %vm117, %v216, 0
    %v238 = vsel %vm117, %v217, 0
    %v241 = vsel %vm117, %v218, 0
    %243 = vmatpush.msra.mxu0 0.0
    %244 = vmatpush.msra.mxu0 0.0
    %245 = vmatpush.msra.mxu0 0.0
    %246 = vmatpush.msra.mxu0 0.0
    %247 = vmatpush.msra.mxu0 0.0
    %248 = vmatpush.msra.mxu0 0.0
    %249 = vmatpush.msra.mxu0 0.0
    %250 = vmatpush.msra.mxu0 0.0
    %251 = vmatpush.msra.mxu0 0.0
    %252 = vmatpush.msra.mxu0 0.0
    %253 = vmatpush.msra.mxu0 0.0
    %254 = vmatpush.msra.mxu0 0.0
    %255 = vmatpush.msra.mxu0 %v99
    %256 = vmatpush.msra.mxu0 %v98
    %257 = vmatpush.msra.mxu0 %v97
    %258 = vmatpush.msra.mxu0 %v96
    %259 = vmatmul.f32.gmra.mxu0 %v232
    %v260 = vpop.f32.mrf.mxu0
    %v261 = vadd.f32 0.0, %v260
    %262 = vmatmul.f32.gmra.mxu0 %v235
    %v263 = vpop.f32.mrf.mxu0
    %v264 = vadd.f32 0.0, %v263
    %265 = vmatmul.f32.gmra.mxu0 %v238
    %v266 = vpop.f32.mrf.mxu0
    %v267 = vadd.f32 0.0, %v266
    %268 = vmatmul.f32.gmra.mxu0 %v241
    %v269 = vpop.f32.mrf.mxu0
    %v270 = vadd.f32 0.0, %v269
    %271 = vdwg.mxu0
    %v272 = vmul.f32 %v261, %v100
    %v273 = vmul.f32 %v264, %v101
    %v274 = vmul.f32 %v267, %v102
    %v275 = vmul.f32 %v270, %v103
    %v277 = vsel %vm117, %v55, 0
    %v280 = vsel %vm117, %v56, 0
    %v283 = vsel %vm117, %v57, 0
    %v286 = vsel %vm117, %v58, 0
    %v289 = vsel %vm117, %v59, 0
    %v292 = vsel %vm117, %v60, 0
    %v295 = vsel %vm117, %v61, 0
    %v298 = vsel %vm117, %v62, 0
    %v301 = vsel %vm117, %v63, 0
    %v304 = vsel %vm117, %v64, 0
    %v307 = vsel %vm117, %v65, 0
    %v310 = vsel %vm117, %v66, 0
    %v313 = vsel %vm117, %v67, 0
    %v316 = vsel %vm117, %v68, 0
    %v319 = vsel %vm117, %v69, 0
    %v322 = vsel %vm117, %v70, 0
    %324 = vmatpush.msra.mxu0 0.0
    %325 = vmatpush.msra.mxu0 0.0
    %326 = vmatpush.msra.mxu0 0.0
    %327 = vmatpush.msra.mxu0 0.0
    %328 = vmatpush.msra.mxu0 0.0
    %329 = vmatpush.msra.mxu0 0.0
    %330 = vmatpush.msra.mxu0 0.0
    %331 = vmatpush.msra.mxu0 0.0
    %332 = vmatpush.msra.mxu0 0.0
    %333 = vmatpush.msra.mxu0 0.0
    %334 = vmatpush.msra.mxu0 0.0
    %335 = vmatpush.msra.mxu0 0.0
    %336 = vmatpush.msra.mxu0 %v18
    %337 = vmatpush.msra.mxu0 %v17
    %338 = vmatpush.msra.mxu0 %v16
    %339 = vmatpush.msra.mxu0 %v15
    %340 = vmatmul.f32.gmra.mxu0 %v277
    %v341 = vpop.f32.mrf.mxu0
    %v342 = vadd.f32 0.0, %v341
    %343 = vmatmul.f32.gmra.mxu0 %v280
    %v344 = vpop.f32.mrf.mxu0
    %v345 = vadd.f32 0.0, %v344
    %346 = vmatmul.f32.gmra.mxu0 %v283
    %v347 = vpop.f32.mrf.mxu0
    %v348 = vadd.f32 0.0, %v347
    %349 = vmatmul.f32.gmra.mxu0 %v286
    %v350 = vpop.f32.mrf.mxu0
    %v351 = vadd.f32 0.0, %v350
    %352 = vmatmul.f32.gmra.mxu0 %v289
    %v353 = vpop.f32.mrf.mxu0
    %v354 = vadd.f32 0.0, %v353
    %355 = vmatmul.f32.gmra.mxu0 %v292
    %v356 = vpop.f32.mrf.mxu0
    %v357 = vadd.f32 0.0, %v356
    %358 = vmatmul.f32.gmra.mxu0 %v295
    %v359 = vpop.f32.mrf.mxu0
    %v360 = vadd.f32 0.0, %v359
    %361 = vmatmul.f32.gmra.mxu0 %v298
    %v362 = vpop.f32.mrf.mxu0
    %v363 = vadd.f32 0.0, %v362
    %364 = vmatmul.f32.gmra.mxu0 %v301
    %v365 = vpop.f32.mrf.mxu0
    %v366 = vadd.f32 0.0, %v365
    %367 = vmatmul.f32.gmra.mxu0 %v304
    %v368 = vpop.f32.mrf.mxu0
    %v369 = vadd.f32 0.0, %v368
    %370 = vmatmul.f32.gmra.mxu0 %v307
    %v371 = vpop.f32.mrf.mxu0
    %v372 = vadd.f32 0.0, %v371
    %373 = vmatmul.f32.gmra.mxu0 %v310
    %v374 = vpop.f32.mrf.mxu0
    %v375 = vadd.f32 0.0, %v374
    %376 = vmatmul.f32.gmra.mxu0 %v313
    %v377 = vpop.f32.mrf.mxu0
    %v378 = vadd.f32 0.0, %v377
    %379 = vmatmul.f32.gmra.mxu0 %v316
    %v380 = vpop.f32.mrf.mxu0
    %v381 = vadd.f32 0.0, %v380
    %382 = vmatmul.f32.gmra.mxu0 %v319
    %v383 = vpop.f32.mrf.mxu0
    %v384 = vadd.f32 0.0, %v383
    %385 = vmatmul.f32.gmra.mxu0 %v322
    %v386 = vpop.f32.mrf.mxu0
    %v387 = vadd.f32 0.0, %v386
    %388 = vdwg.mxu0
    %v389 = vmul.f32 %v342, %v39
    %v390 = vmul.f32 %v345, %v40
    %v391 = vmul.f32 %v348, %v41
    %v392 = vmul.f32 %v351, %v42
    %v393 = vmul.f32 %v354, %v43
    %v394 = vmul.f32 %v357, %v44
    %v395 = vmul.f32 %v360, %v45
    %v396 = vmul.f32 %v363, %v46
    %v397 = vmul.f32 %v366, %v47
    %v398 = vmul.f32 %v369, %v48
    %v399 = vmul.f32 %v372, %v49
    %v400 = vmul.f32 %v375, %v50
    %v401 = vmul.f32 %v378, %v51
    %v402 = vmul.f32 %v381, %v52
    %v403 = vmul.f32 %v384, %v53
    %v404 = vmul.f32 %v387, %v54
    %v406 = vsel %vm117, %v389, 0
    %v409 = vsel %vm117, %v390, 0
    %v412 = vsel %vm117, %v391, 0
    %v415 = vsel %vm117, %v392, 0
    %v418 = vsel %vm117, %v393, 0
    %v421 = vsel %vm117, %v394, 0
    %v424 = vsel %vm117, %v395, 0
    %v427 = vsel %vm117, %v396, 0
    %v430 = vsel %vm117, %v397, 0
    %v433 = vsel %vm117, %v398, 0
    %v436 = vsel %vm117, %v399, 0
    %v439 = vsel %vm117, %v400, 0
    %v442 = vsel %vm117, %v401, 0
    %v445 = vsel %vm117, %v402, 0
    %v448 = vsel %vm117, %v403, 0
    %v451 = vsel %vm117, %v404, 0
    %453 = vmatpush.msra.mxu0 0.0
    %454 = vmatpush.msra.mxu0 0.0
    %455 = vmatpush.msra.mxu0 0.0
    %456 = vmatpush.msra.mxu0 0.0
    %457 = vmatpush.msra.mxu0 0.0
    %458 = vmatpush.msra.mxu0 0.0
    %459 = vmatpush.msra.mxu0 0.0
    %460 = vmatpush.msra.mxu0 0.0
    %461 = vmatpush.msra.mxu0 0.0
    %462 = vmatpush.msra.mxu0 0.0
    %463 = vmatpush.msra.mxu0 0.0
    %464 = vmatpush.msra.mxu0 0.0
    %465 = vmatpush.msra.mxu0 %v22
    %466 = vmatpush.msra.mxu0 %v21
    %467 = vmatpush.msra.mxu0 %v20
    %468 = vmatpush.msra.mxu0 %v19
    %469 = vmatmul.f32.gmra.mxu0 %v406
    %v470 = vpop.f32.mrf.mxu0
    %v471 = vadd.f32 0.0, %v470
    %472 = vmatmul.f32.gmra.mxu0 %v409
    %v473 = vpop.f32.mrf.mxu0
    %v474 = vadd.f32 0.0, %v473
    %475 = vmatmul.f32.gmra.mxu0 %v412
    %v476 = vpop.f32.mrf.mxu0
    %v477 = vadd.f32 0.0, %v476
    %478 = vmatmul.f32.gmra.mxu0 %v415
    %v479 = vpop.f32.mrf.mxu0
    %v480 = vadd.f32 0.0, %v479
    %481 = vmatmul.f32.gmra.mxu0 %v418
    %v482 = vpop.f32.mrf.mxu0
    %v483 = vadd.f32 0.0, %v482
    %484 = vmatmul.f32.gmra.mxu0 %v421
    %v485 = vpop.f32.mrf.mxu0
    %v486 = vadd.f32 0.0, %v485
    %487 = vmatmul.f32.gmra.mxu0 %v424
    %v488 = vpop.f32.mrf.mxu0
    %v489 = vadd.f32 0.0, %v488
    %490 = vmatmul.f32.gmra.mxu0 %v427
    %v491 = vpop.f32.mrf.mxu0
    %v492 = vadd.f32 0.0, %v491
    %493 = vmatmul.f32.gmra.mxu0 %v430
    %v494 = vpop.f32.mrf.mxu0
    %v495 = vadd.f32 0.0, %v494
    %496 = vmatmul.f32.gmra.mxu0 %v433
    %v497 = vpop.f32.mrf.mxu0
    %v498 = vadd.f32 0.0, %v497
    %499 = vmatmul.f32.gmra.mxu0 %v436
    %v500 = vpop.f32.mrf.mxu0
    %v501 = vadd.f32 0.0, %v500
    %502 = vmatmul.f32.gmra.mxu0 %v439
    %v503 = vpop.f32.mrf.mxu0
    %v504 = vadd.f32 0.0, %v503
    %505 = vmatmul.f32.gmra.mxu0 %v442
    %v506 = vpop.f32.mrf.mxu0
    %v507 = vadd.f32 0.0, %v506
    %508 = vmatmul.f32.gmra.mxu0 %v445
    %v509 = vpop.f32.mrf.mxu0
    %v510 = vadd.f32 0.0, %v509
    %511 = vmatmul.f32.gmra.mxu0 %v448
    %v512 = vpop.f32.mrf.mxu0
    %v513 = vadd.f32 0.0, %v512
    %514 = vmatmul.f32.gmra.mxu0 %v451
    %v515 = vpop.f32.mrf.mxu0
    %v516 = vadd.f32 0.0, %v515
    %517 = vdwg.mxu0
    %v518 = vsel %vm117, %v179, 0
    %v520 = vsel %vm117, %v180, 0
    %v522 = vsel %vm117, %v181, 0
    %v524 = vsel %vm117, %v182, 0
    %526 = vmatpush.msra.mxu0 0.0
    %527 = vmatpush.msra.mxu0 0.0
    %528 = vmatpush.msra.mxu0 0.0
    %529 = vmatpush.msra.mxu0 0.0
    %530 = vmatpush.msra.mxu0 0.0
    %531 = vmatpush.msra.mxu0 0.0
    %532 = vmatpush.msra.mxu0 0.0
    %533 = vmatpush.msra.mxu0 0.0
    %534 = vmatpush.msra.mxu0 0.0
    %535 = vmatpush.msra.mxu0 0.0
    %536 = vmatpush.msra.mxu0 0.0
    %537 = vmatpush.msra.mxu0 0.0
    %538 = vmatpush.msra.mxu0 %v275
    %539 = vmatpush.msra.mxu0 %v274
    %540 = vmatpush.msra.mxu0 %v273
    %541 = vmatpush.msra.mxu0 %v272
    %542 = vmatmul.f32.gmra.mxu0 %v518
    %v543 = vpop.f32.mrf.mxu0
    %v544 = vadd.f32 %v108, %v543
    %545 = vmatmul.f32.gmra.mxu0 %v520
    %v546 = vpop.f32.mrf.mxu0
    %v547 = vadd.f32 %v109, %v546
    %548 = vmatmul.f32.gmra.mxu0 %v522
    %v549 = vpop.f32.mrf.mxu0
    %v550 = vadd.f32 %v110, %v549
    %551 = vmatmul.f32.gmra.mxu0 %v524
    %v552 = vpop.f32.mrf.mxu0
    %v553 = vadd.f32 %v111, %v552
    %554 = vdwg.mxu0
    %555 = vmax.xlane.f32.xlu0 %v544
    %v556 = vpop.xlane.xlu0 %555
    %557 = vmax.xlane.f32.xlu0 %v547
    %v558 = vpop.xlane.xlu0 %557
    %559 = vmax.xlane.f32.xlu0 %v550
    %v560 = vpop.xlane.xlu0 %559
    %561 = vmax.xlane.f32.xlu0 %v553
    %v562 = vpop.xlane.xlu0 %561
    %v563 = vsub.f32 %v544, %v556
    %v564 = vsub.f32 %v547, %v558
    %v565 = vsub.f32 %v550, %v560
    %v566 = vsub.f32 %v553, %v562
    %v567 = vmul.f32 %v563, 1.442695
    %v568 = vpow.pop %v567
    %v569 = vmul.f32 %v564, 1.442695
    %v570 = vpow.pop %v569
    %v571 = vmul.f32 %v565, 1.442695
    %v572 = vpow.pop %v571
    %v573 = vmul.f32 %v566, 1.442695
    %v574 = vpow.pop %v573
    %575 = vmatpush.msra.mxu0 %v86
    %576 = vmatpush.msra.mxu0 %v85
    %577 = vmatpush.msra.mxu0 %v84
    %578 = vmatpush.msra.mxu0 %v83
    %579 = vmatpush.msra.mxu0 %v82
    %580 = vmatpush.msra.mxu0 %v81
    %581 = vmatpush.msra.mxu0 %v80
    %582 = vmatpush.msra.mxu0 %v79
    %583 = vmatpush.msra.mxu0 %v78
    %584 = vmatpush.msra.mxu0 %v77
    %585 = vmatpush.msra.mxu0 %v76
    %586 = vmatpush.msra.mxu0 %v75
    %587 = vmatpush.msra.mxu0 %v74
    %588 = vmatpush.msra.mxu0 %v73
    %589 = vmatpush.msra.mxu0 %v72
    %590 = vmatpush.msra.mxu0 %v71
    %591 = vmatmul.f32.gmra.mxu0 %v568
    %v592 = vpop.f32.mrf.mxu0
    %v593 = vadd.f32 0.0, %v592
    %594 = vmatmul.f32.gmra.mxu0 %v570
    %v595 = vpop.f32.mrf.mxu0
    %v596 = vadd.f32 0.0, %v595
    %597 = vmatmul.f32.gmra.mxu0 %v572
    %v598 = vpop.f32.mrf.mxu0
    %v599 = vadd.f32 0.0, %v598
    %600 = vmatmul.f32.gmra.mxu0 %v574
    %v601 = vpop.f32.mrf.mxu0
    %v602 = vadd.f32 0.0, %v601
    %603 = vdwg.mxu0
    %v604 = vrcp.pop %v593
    %v605 = vrcp.pop %v596
    %v606 = vrcp.pop %v599
    %v607 = vrcp.pop %v602
    %v609 = vsel %vm117, %v604, 0
    %v612 = vsel %vm117, %v605, 0
    %v615 = vsel %vm117, %v606, 0
    %v618 = vsel %vm117, %v607, 0
    %620 = vmatpush.msra.mxu0 0.0
    %621 = vmatpush.msra.mxu0 0.0
    %622 = vmatpush.msra.mxu0 0.0
    %623 = vmatpush.msra.mxu0 0.0
    %624 = vmatpush.msra.mxu0 0.0
    %625 = vmatpush.msra.mxu0 0.0
    %626 = vmatpush.msra.mxu0 0.0
    %627 = vmatpush.msra.mxu0 0.0
    %628 = vmatpush.msra.mxu0 0.0
    %629 = vmatpush.msra.mxu0 0.0
    %630 = vmatpush.msra.mxu0 0.0
    %631 = vmatpush.msra.mxu0 0.0
    %632 = vmatpush.msra.mxu0 %v107
    %633 = vmatpush.msra.mxu0 %v106
    %634 = vmatpush.msra.mxu0 %v105
    %635 = vmatpush.msra.mxu0 %v104
    %636 = vmatmul.f32.gmra.mxu0 %v609
    %v637 = vpop.f32.mrf.mxu0
    %v638 = vadd.f32 0.0, %v637
    %639 = vmatmul.f32.gmra.mxu0 %v612
    %v640 = vpop.f32.mrf.mxu0
    %v641 = vadd.f32 0.0, %v640
    %642 = vmatmul.f32.gmra.mxu0 %v615
    %v643 = vpop.f32.mrf.mxu0
    %v644 = vadd.f32 0.0, %v643
    %645 = vmatmul.f32.gmra.mxu0 %v618
    %v646 = vpop.f32.mrf.mxu0
    %v647 = vadd.f32 0.0, %v646
    %648 = vdwg.mxu0
    %v649 = vmul.f32 %v568, %v638
    %v650 = vmul.f32 %v570, %v641
    %v651 = vmul.f32 %v572, %v644
    %v652 = vmul.f32 %v574, %v647
    %v653 = vperm.slane %v87, 0
    %654 = vmatpush.msra.mxu0 %v516
    %655 = vmatpush.msra.mxu0 %v513
    %656 = vmatpush.msra.mxu0 %v510
    %657 = vmatpush.msra.mxu0 %v507
    %658 = vmatpush.msra.mxu0 %v504
    %659 = vmatpush.msra.mxu0 %v501
    %660 = vmatpush.msra.mxu0 %v498
    %661 = vmatpush.msra.mxu0 %v495
    %662 = vmatpush.msra.mxu0 %v492
    %663 = vmatpush.msra.mxu0 %v489
    %664 = vmatpush.msra.mxu0 %v486
    %665 = vmatpush.msra.mxu0 %v483
    %666 = vmatpush.msra.mxu0 %v480
    %667 = vmatpush.msra.mxu0 %v477
    %668 = vmatpush.msra.mxu0 %v474
    %669 = vmatpush.msra.mxu0 %v471
    %670 = vmatmul.f32.gmra.mxu0 %v649
    %v671 = vpop.f32.mrf.mxu0
    %v672 = vadd.f32 %v653, %v671
    %673 = vmatmul.f32.gmra.mxu0 %v650
    %v674 = vpop.f32.mrf.mxu0
    %v675 = vadd.f32 %v653, %v674
    %676 = vmatmul.f32.gmra.mxu0 %v651
    %v677 = vpop.f32.mrf.mxu0
    %v678 = vadd.f32 %v653, %v677
    %679 = vmatmul.f32.gmra.mxu0 %v652
    %v680 = vpop.f32.mrf.mxu0
    %v681 = vadd.f32 %v653, %v680
    %682 = vdwg.mxu0
    %v683 = vadd.f32 %v15, %v672
    %v684 = vadd.f32 %v16, %v675
    %v685 = vadd.f32 %v17, %v678
    %v686 = vadd.f32 %v18, %v681
    %v687 = vsel %vm117, %v683, 0.0
    %688 = vadd.xlane.f32.xlu0 %v687
    %v689 = vpop.xlane.xlu0 %688
    %v690 = vsel %vm117, %v684, 0.0
    %691 = vadd.xlane.f32.xlu0 %v690
    %v692 = vpop.xlane.xlu0 %691
    %v693 = vsel %vm117, %v685, 0.0
    %694 = vadd.xlane.f32.xlu0 %v693
    %v695 = vpop.xlane.xlu0 %694
    %v696 = vsel %vm117, %v686, 0.0
    %697 = vadd.xlane.f32.xlu0 %v696
    %v698 = vpop.xlane.xlu0 %697
    %v699 = vrcp.pop 32.0
    %v700 = vmul.f32 32.0, %v699
    %v701 = vsub.f32 1.0, %v700
    %v702 = vmul.f32 %v699, %v701
    %v703 = vadd.f32 %v699, %v702
    %vm704 = vweird.f32 %v699
    %v705 = vsel %vm704, %v699, %v703
    %v706 = vmul.f32 %v689, %v705
    %v707 = vmul.f32 %v692, %v705
    %v708 = vmul.f32 %v695, %v705
    %v709 = vmul.f32 %v698, %v705
    %v710 = vmul.f32 %v683, %v683
    %v711 = vmul.f32 %v684, %v684
    %v712 = vmul.f32 %v685, %v685
    %v713 = vmul.f32 %v686, %v686
    %v714 = vsel %vm117, %v710, 0.0
    %715 = vadd.xlane.f32.xlu0 %v714
    %v716 = vpop.xlane.xlu0 %715
    %v717 = vsel %vm117, %v711, 0.0
    %718 = vadd.xlane.f32.xlu0 %v717
    %v719 = vpop.xlane.xlu0 %718
    %v720 = vsel %vm117, %v712, 0.0
    %721 = vadd.xlane.f32.xlu0 %v720
    %v722 = vpop.xlane.xlu0 %721
    %v723 = vsel %vm117, %v713, 0.0
    %724 = vadd.xlane.f32.xlu0 %v723
    %v725 = vpop.xlane.xlu0 %724
    %v726 = vmul.f32 %v716, %v705
    %v727 = vmul.f32 %v719, %v705
    %v728 = vmul.f32 %v722, %v705
    %v729 = vmul.f32 %v725, %v705
    %v730 = vmul.f32 %v706, %v706
    %v731 = vmul.f32 %v707, %v707
    %v732 = vmul.f32 %v708, %v708
    %v733 = vmul.f32 %v709, %v709
    %v734 = vsub.f32 %v726, %v730
    %v735 = vsub.f32 %v727, %v731
    %v736 = vsub.f32 %v728, %v732
    %v737 = vsub.f32 %v729, %v733
    %v738 = vsub.f32 %v683, %v706
    %v739 = vsub.f32 %v684, %v707
    %v740 = vsub.f32 %v685, %v708
    %v741 = vsub.f32 %v686, %v709
    %v742 = vadd.f32 %v734, 1e-05
    %v743 = vadd.f32 %v735, 1e-05
    %v744 = vadd.f32 %v736, 1e-05
    %v745 = vadd.f32 %v737, 1e-05
    %v746 = vrsqrt.pop %v742
    %v747 = vmul.f32 %v746, %v742
    %v748 = vmul.f32 %v747, %v746
    %v749 = vmul.f32 0.5, %v748
    %v750 = vsub.f32 1.5, %v749
    %v751 = vmul.f32 %v746, %v750
    %vm752 = vweird.f32 %v742
    %vm753 = vweird.f32 %v746
    %vm754 = vmor %vm752, %vm753
    %v755 = vsel %vm754, %v746, %v751
    %v756 = vrsqrt.pop %v743
    %v757 = vmul.f32 %v756, %v743
    %v758 = vmul.f32 %v757, %v756
    %v759 = vmul.f32 0.5, %v758
    %v760 = vsub.f32 1.5, %v759
    %v761 = vmul.f32 %v756, %v760
    %vm762 = vweird.f32 %v743
    %vm763 = vweird.f32 %v756
    %vm764 = vmor %vm762, %vm763
    %v765 = vsel %vm764, %v756, %v761
    %v766 = vrsqrt.pop %v744
    %v767 = vmul.f32 %v766, %v744
    %v768 = vmul.f32 %v767, %v766
    %v769 = vmul.f32 0.5, %v768
    %v770 = vsub.f32 1.5, %v769
    %v771 = vmul.f32 %v766, %v770
    %vm772 = vweird.f32 %v744
    %vm773 = vweird.f32 %v766
    %vm774 = vmor %vm772, %vm773
    %v775 = vsel %vm774, %v766, %v771
    %v776 = vrsqrt.pop %v745
    %v777 = vmul.f32 %v776, %v745
    %v778 = vmul.f32 %v777, %v776
    %v779 = vmul.f32 0.5, %v778
    %v780 = vsub.f32 1.5, %v779
    %v781 = vmul.f32 %v776, %v780
    %vm782 = vweird.f32 %v745
    %vm783 = vweird.f32 %v776
    %vm784 = vmor %vm782, %vm783
    %v785 = vsel %vm784, %v776, %v781
    %v786 = vmul.f32 %v738, %v755
    %v787 = vmul.f32 %v739, %v765
    %v788 = vmul.f32 %v740, %v775
    %v789 = vmul.f32 %v741, %v785
    %v790 = vperm.slane %v87, 2
    %v791 = vmul.f32 %v786, %v790
    %v792 = vmul.f32 %v787, %v790
    %v793 = vmul.f32 %v788, %v790
    %v794 = vmul.f32 %v789, %v790
    %v795 = vperm.slane %v87, 3
    %v796 = vadd.f32 %v791, %v795
    %v797 = vadd.f32 %v792, %v795
    %v798 = vadd.f32 %v793, %v795
    %v799 = vadd.f32 %v794, %v795
    %v800 = vperm.slane %v116, 0
    %v802 = vsel %vm117, %v796, 0
    %v805 = vsel %vm117, %v797, 0
    %v808 = vsel %vm117, %v798, 0
    %v811 = vsel %vm117, %v799, 0
    %813 = vmatpush.msra.mxu0 0.0
    %814 = vmatpush.msra.mxu0 0.0
    %815 = vmatpush.msra.mxu0 0.0
    %816 = vmatpush.msra.mxu0 0.0
    %817 = vmatpush.msra.mxu0 0.0
    %818 = vmatpush.msra.mxu0 0.0
    %819 = vmatpush.msra.mxu0 0.0
    %820 = vmatpush.msra.mxu0 0.0
    %821 = vmatpush.msra.mxu0 0.0
    %822 = vmatpush.msra.mxu0 0.0
    %823 = vmatpush.msra.mxu0 0.0
    %824 = vmatpush.msra.mxu0 0.0
    %825 = vmatpush.msra.mxu0 %v115
    %826 = vmatpush.msra.mxu0 %v114
    %827 = vmatpush.msra.mxu0 %v113
    %828 = vmatpush.msra.mxu0 %v112
    %829 = vmatmul.f32.gmra.mxu0 %v802
    %v830 = vpop.f32.mrf.mxu0
    %v831 = vadd.f32 %v800, %v830
    %832 = vmatmul.f32.gmra.mxu0 %v805
    %v833 = vpop.f32.mrf.mxu0
    %v834 = vadd.f32 %v800, %v833
    %835 = vmatmul.f32.gmra.mxu0 %v808
    %v836 = vpop.f32.mrf.mxu0
    %v837 = vadd.f32 %v800, %v836
    %838 = vmatmul.f32.gmra.mxu0 %v811
    %v839 = vpop.f32.mrf.mxu0
    %v840 = vadd.f32 %v800, %v839
    %841 = vdwg.mxu0
    %v842 = vmul.f32 %v831, 0.5
    %v843 = vmul.f32 %v834, 0.5
    %v844 = vmul.f32 %v837, 0.5
    %v845 = vmul.f32 %v840, 0.5
    %v846 = vmul.f32 %v831, 0.70710677
    %v847 = vmul.f32 %v834, 0.70710677
    %v848 = vmul.f32 %v837, 0.70710677
    %v849 = vmul.f32 %v840, 0.70710677
    %v850 = vmul.f32 %v846, %v846
    %v851 = vmin.f32 16.0, %v850
    %v852 = vmul.f32 %v851, 2.1237322e-06
    %v853 = vadd.f32 %v852, 0.00028619796
    %v854 = vmul.f32 %v851, %v853
    %v855 = vadd.f32 %v854, 0.0036580483
    %v856 = vmul.f32 %v851, %v855
    %v857 = vadd.f32 %v856, 0.05243302
    %v858 = vmul.f32 %v851, %v857
    %v859 = vadd.f32 %v858, 0.18741608
    %v860 = vmul.f32 %v851, %v859
    %v861 = vadd.f32 %v860, 1.1283791
    %v862 = vmul.f32 %v846, %v861
    %v863 = vmul.f32 %v851, 3.8918573e-05
    %v864 = vadd.f32 %v863, 0.001143296
    %v865 = vmul.f32 %v851, %v864
    %v866 = vadd.f32 %v865, 0.014752088
    %v867 = vmul.f32 %v851, %v866
    %v868 = vadd.f32 %v867, 0.112945676
    %v869 = vmul.f32 %v851, %v868
    %v870 = vadd.f32 %v869, 0.4994258
    %v871 = vmul.f32 %v851, %v870
    %v872 = vadd.f32 %v871, 1.0
    %v873 = vrcp.pop %v872
    %v874 = vmul.f32 %v872, %v873
    %v875 = vsub.f32 1.0, %v874
    %v876 = vmul.f32 %v873, %v875
    %v877 = vadd.f32 %v873, %v876
    %vm878 = vweird.f32 %v872
    %vm879 = vweird.f32 %v873
    %vm880 = vmor %vm878, %vm879
    %v881 = vsel %vm880, %v873, %v877
    %v882 = vand.u32 2147483647, %v872
    %vm883 = vcmp.eq.f32.partialorder %v882, 8.507059e+37
    %v884 = vand.u32 %v872, 2147483648
    %v885 = vor.u32 1.1754944e-38, %v884
    %v886 = vsel %vm883, %v885, %v881
    %v887 = vmul.f32 %v862, %v886
    %v888 = vmin.f32 %v887, 1.0
    %v889 = vmax.f32 %v888, -1.0
    %v890 = vmul.f32 %v847, %v847
    %v891 = vmin.f32 16.0, %v890
    %v892 = vmul.f32 %v891, 2.1237322e-06
    %v893 = vadd.f32 %v892, 0.00028619796
    %v894 = vmul.f32 %v891, %v893
    %v895 = vadd.f32 %v894, 0.0036580483
    %v896 = vmul.f32 %v891, %v895
    %v897 = vadd.f32 %v896, 0.05243302
    %v898 = vmul.f32 %v891, %v897
    %v899 = vadd.f32 %v898, 0.18741608
    %v900 = vmul.f32 %v891, %v899
    %v901 = vadd.f32 %v900, 1.1283791
    %v902 = vmul.f32 %v847, %v901
    %v903 = vmul.f32 %v891, 3.8918573e-05
    %v904 = vadd.f32 %v903, 0.001143296
    %v905 = vmul.f32 %v891, %v904
    %v906 = vadd.f32 %v905, 0.014752088
    %v907 = vmul.f32 %v891, %v906
    %v908 = vadd.f32 %v907, 0.112945676
    %v909 = vmul.f32 %v891, %v908
    %v910 = vadd.f32 %v909, 0.4994258
    %v911 = vmul.f32 %v891, %v910
    %v912 = vadd.f32 %v911, 1.0
    %v913 = vrcp.pop %v912
    %v914 = vmul.f32 %v912, %v913
    %v915 = vsub.f32 1.0, %v914
    %v916 = vmul.f32 %v913, %v915
    %v917 = vadd.f32 %v913, %v916
    %vm918 = vweird.f32 %v912
    %vm919 = vweird.f32 %v913
    %vm920 = vmor %vm918, %vm919
    %v921 = vsel %vm920, %v913, %v917
    %v922 = vand.u32 2147483647, %v912
    %vm923 = vcmp.eq.f32.partialorder %v922, 8.507059e+37
    %v924 = vand.u32 %v912, 2147483648
    %v925 = vor.u32 1.1754944e-38, %v924
    %v926 = vsel %vm923, %v925, %v921
    %v927 = vmul.f32 %v902, %v926
    %v928 = vmin.f32 %v927, 1.0
    %v929 = vmax.f32 %v928, -1.0
    %v930 = vmul.f32 %v848, %v848
    %v931 = vmin.f32 16.0, %v930
    %v932 = vmul.f32 %v931, 2.1237322e-06
    %v933 = vadd.f32 %v932, 0.00028619796
    %v934 = vmul.f32 %v931, %v933
    %v935 = vadd.f32 %v934, 0.0036580483
    %v936 = vmul.f32 %v931, %v935
    %v937 = vadd.f32 %v936, 0.05243302
    %v938 = vmul.f32 %v931, %v937
    %v939 = vadd.f32 %v938, 0.18741608
    %v940 = vmul.f32 %v931, %v939
    %v941 = vadd.f32 %v940, 1.1283791
    %v942 = vmul.f32 %v848, %v941
    %v943 = vmul.f32 %v931, 3.8918573e-05
    %v944 = vadd.f32 %v943, 0.001143296
    %v945 = vmul.f32 %v931, %v944
    %v946 = vadd.f32 %v945, 0.014752088
    %v947 = vmul.f32 %v931, %v946
    %v948 = vadd.f32 %v947, 0.112945676
    %v949 = vmul.f32 %v931, %v948
    %v950 = vadd.f32 %v949, 0.4994258
    %v951 = vmul.f32 %v931, %v950
    %v952 = vadd.f32 %v951, 1.0
    %v953 = vrcp.pop %v952
    %v954 = vmul.f32 %v952, %v953
    %v955 = vsub.f32 1.0, %v954
    %v956 = vmul.f32 %v953, %v955
    %v957 = vadd.f32 %v953, %v956
    %vm958 = vweird.f32 %v952
    %vm959 = vweird.f32 %v953
    %vm960 = vmor %vm958, %vm959
    %v961 = vsel %vm960, %v953, %v957
    %v962 = vand.u32 2147483647, %v952
    %vm963 = vcmp.eq.f32.partialorder %v962, 8.507059e+37
    %v964 = vand.u32 %v952, 2147483648
    %v965 = vor.u32 1.1754944e-38, %v964
    %v966 = vsel %vm963, %v965, %v961
    %v967 = vmul.f32 %v942, %v966
    %v968 = vmin.f32 %v967, 1.0
    %v969 = vmax.f32 %v968, -1.0
    %v970 = vmul.f32 %v849, %v849
    %v971 = vmin.f32 16.0, %v970
    %v972 = vmul.f32 %v971, 2.1237322e-06
    %v973 = vadd.f32 %v972, 0.00028619796
    %v974 = vmul.f32 %v971, %v973
    %v975 = vadd.f32 %v974, 0.0036580483
    %v976 = vmul.f32 %v971, %v975
    %v977 = vadd.f32 %v976, 0.05243302
    %v978 = vmul.f32 %v971, %v977
    %v979 = vadd.f32 %v978, 0.18741608
    %v980 = vmul.f32 %v971, %v979
    %v981 = vadd.f32 %v980, 1.1283791
    %v982 = vmul.f32 %v849, %v981
    %v983 = vmul.f32 %v971, 3.8918573e-05
    %v984 = vadd.f32 %v983, 0.001143296
    %v985 = vmul.f32 %v971, %v984
    %v986 = vadd.f32 %v985, 0.014752088
    %v987 = vmul.f32 %v971, %v986
    %v988 = vadd.f32 %v987, 0.112945676
    %v989 = vmul.f32 %v971, %v988
    %v990 = vadd.f32 %v989, 0.4994258
    %v991 = vmul.f32 %v971, %v990
    %v992 = vadd.f32 %v991, 1.0
    %v993 = vrcp.pop %v992
    %v994 = vmul.f32 %v992, %v993
    %v995 = vsub.f32 1.0, %v994
    %v996 = vmul.f32 %v993, %v995
    %v997 = vadd.f32 %v993, %v996
    %vm998 = vweird.f32 %v992
    %vm999 = vweird.f32 %v993
    %vm1000 = vmor %vm998, %vm999
    %v1001 = vsel %vm1000, %v993, %v997
    %v1002 = vand.u32 2147483647, %v992
    %vm1003 = vcmp.eq.f32.partialorder %v1002, 8.507059e+37
    %v1004 = vand.u32 %v992, 2147483648
    %v1005 = vor.u32 1.1754944e-38, %v1004
    %v1006 = vsel %vm1003, %v1005, %v1001
    %v1007 = vmul.f32 %v982, %v1006
    %v1008 = vmin.f32 %v1007, 1.0
    %v1009 = vmax.f32 %v1008, -1.0
    %v1010 = vadd.f32 %v889, 1.0
    %v1011 = vadd.f32 %v929, 1.0
    %v1012 = vadd.f32 %v969, 1.0
    %v1013 = vadd.f32 %v1009, 1.0
    %v1014 = vmul.f32 %v842, %v1010
    %v1015 = vmul.f32 %v843, %v1011
    %v1016 = vmul.f32 %v844, %v1012
    %v1017 = vmul.f32 %v845, %v1013
    %v1018 = vperm.slane %v87, 1
    %1019 = vmatpush.msra.mxu0 %v38
    %1020 = vmatpush.msra.mxu0 %v37
    %1021 = vmatpush.msra.mxu0 %v36
    %1022 = vmatpush.msra.mxu0 %v35
    %1023 = vmatpush.msra.mxu0 %v34
    %1024 = vmatpush.msra.mxu0 %v33
    %1025 = vmatpush.msra.mxu0 %v32
    %1026 = vmatpush.msra.mxu0 %v31
    %1027 = vmatpush.msra.mxu0 %v30
    %1028 = vmatpush.msra.mxu0 %v29
    %1029 = vmatpush.msra.mxu0 %v28
    %1030 = vmatpush.msra.mxu0 %v27
    %1031 = vmatpush.msra.mxu0 %v26
    %1032 = vmatpush.msra.mxu0 %v25
    %1033 = vmatpush.msra.mxu0 %v24
    %1034 = vmatpush.msra.mxu0 %v23
    %1035 = vmatmul.f32.gmra.mxu0 %v1014
    %v1036 = vpop.f32.mrf.mxu0
    %v1037 = vadd.f32 %v1018, %v1036
    %1038 = vmatmul.f32.gmra.mxu0 %v1015
    %v1039 = vpop.f32.mrf.mxu0
    %v1040 = vadd.f32 %v1018, %v1039
    %1041 = vmatmul.f32.gmra.mxu0 %v1016
    %v1042 = vpop.f32.mrf.mxu0
    %v1043 = vadd.f32 %v1018, %v1042
    %1044 = vmatmul.f32.gmra.mxu0 %v1017
    %v1045 = vpop.f32.mrf.mxu0
    %v1046 = vadd.f32 %v1018, %v1045
    %1047 = vdwg.mxu0
    %v1048 = vadd.f32 %v796, %v1037
    %v1049 = vadd.f32 %v797, %v1040
    %v1050 = vadd.f32 %v798, %v1043
    %v1051 = vadd.f32 %v799, %v1046
    %v1052 = vsel %vm117, %v1048, 0.0
    %1053 = vadd.xlane.f32.xlu0 %v1052
    %v1054 = vpop.xlane.xlu0 %1053
    %v1055 = vsel %vm117, %v1049, 0.0
    %1056 = vadd.xlane.f32.xlu0 %v1055
    %v1057 = vpop.xlane.xlu0 %1056
    %v1058 = vsel %vm117, %v1050, 0.0
    %1059 = vadd.xlane.f32.xlu0 %v1058
    %v1060 = vpop.xlane.xlu0 %1059
    %v1061 = vsel %vm117, %v1051, 0.0
    %1062 = vadd.xlane.f32.xlu0 %v1061
    %v1063 = vpop.xlane.xlu0 %1062
    %v1064 = vmul.f32 %v1054, %v705
    %v1065 = vmul.f32 %v1057, %v705
    %v1066 = vmul.f32 %v1060, %v705
    %v1067 = vmul.f32 %v1063, %v705
    %v1068 = vmul.f32 %v1048, %v1048
    %v1069 = vmul.f32 %v1049, %v1049
    %v1070 = vmul.f32 %v1050, %v1050
    %v1071 = vmul.f32 %v1051, %v1051
    %v1072 = vsel %vm117, %v1068, 0.0
    %1073 = vadd.xlane.f32.xlu0 %v1072
    %v1074 = vpop.xlane.xlu0 %1073
    %v1075 = vsel %vm117, %v1069, 0.0
    %1076 = vadd.xlane.f32.xlu0 %v1075
    %v1077 = vpop.xlane.xlu0 %1076
    %v1078 = vsel %vm117, %v1070, 0.0
    %1079 = vadd.xlane.f32.xlu0 %v1078
    %v1080 = vpop.xlane.xlu0 %1079
    %v1081 = vsel %vm117, %v1071, 0.0
    %1082 = vadd.xlane.f32.xlu0 %v1081
    %v1083 = vpop.xlane.xlu0 %1082
    %v1084 = vmul.f32 %v1074, %v705
    %v1085 = vmul.f32 %v1077, %v705
    %v1086 = vmul.f32 %v1080, %v705
    %v1087 = vmul.f32 %v1083, %v705
    %v1088 = vmul.f32 %v1064, %v1064
    %v1089 = vmul.f32 %v1065, %v1065
    %v1090 = vmul.f32 %v1066, %v1066
    %v1091 = vmul.f32 %v1067, %v1067
    %v1092 = vsub.f32 %v1084, %v1088
    %v1093 = vsub.f32 %v1085, %v1089
    %v1094 = vsub.f32 %v1086, %v1090
    %v1095 = vsub.f32 %v1087, %v1091
    %v1096 = vsub.f32 %v1048, %v1064
    %v1097 = vsub.f32 %v1049, %v1065
    %v1098 = vsub.f32 %v1050, %v1066
    %v1099 = vsub.f32 %v1051, %v1067
    %v1100 = vadd.f32 %v1092, 1e-05
    %v1101 = vadd.f32 %v1093, 1e-05
    %v1102 = vadd.f32 %v1094, 1e-05
    %v1103 = vadd.f32 %v1095, 1e-05
    %v1104 = vrsqrt.pop %v1100
    %v1105 = vmul.f32 %v1104, %v1100
    %v1106 = vmul.f32 %v1105, %v1104
    %v1107 = vmul.f32 0.5, %v1106
    %v1108 = vsub.f32 1.5, %v1107
    %v1109 = vmul.f32 %v1104, %v1108
    %vm1110 = vweird.f32 %v1100
    %vm1111 = vweird.f32 %v1104
    %vm1112 = vmor %vm1110, %vm1111
    %v1113 = vsel %vm1112, %v1104, %v1109
    %v1114 = vrsqrt.pop %v1101
    %v1115 = vmul.f32 %v1114, %v1101
    %v1116 = vmul.f32 %v1115, %v1114
    %v1117 = vmul.f32 0.5, %v1116
    %v1118 = vsub.f32 1.5, %v1117
    %v1119 = vmul.f32 %v1114, %v1118
    %vm1120 = vweird.f32 %v1101
    %vm1121 = vweird.f32 %v1114
    %vm1122 = vmor %vm1120, %vm1121
    %v1123 = vsel %vm1122, %v1114, %v1119
    %v1124 = vrsqrt.pop %v1102
    %v1125 = vmul.f32 %v1124, %v1102
    %v1126 = vmul.f32 %v1125, %v1124
    %v1127 = vmul.f32 0.5, %v1126
    %v1128 = vsub.f32 1.5, %v1127
    %v1129 = vmul.f32 %v1124, %v1128
    %vm1130 = vweird.f32 %v1102
    %vm1131 = vweird.f32 %v1124
    %vm1132 = vmor %vm1130, %vm1131
    %v1133 = vsel %vm1132, %v1124, %v1129
    %v1134 = vrsqrt.pop %v1103
    %v1135 = vmul.f32 %v1134, %v1103
    %v1136 = vmul.f32 %v1135, %v1134
    %v1137 = vmul.f32 0.5, %v1136
    %v1138 = vsub.f32 1.5, %v1137
    %v1139 = vmul.f32 %v1134, %v1138
    %vm1140 = vweird.f32 %v1103
    %vm1141 = vweird.f32 %v1134
    %vm1142 = vmor %vm1140, %vm1141
    %v1143 = vsel %vm1142, %v1134, %v1139
    %v1144 = vmul.f32 %v1096, %v1113
    %v1145 = vmul.f32 %v1097, %v1123
    %v1146 = vmul.f32 %v1098, %v1133
    %v1147 = vmul.f32 %v1099, %v1143
    %v1148 = vperm.slane %v87, 4
    %v1149 = vmul.f32 %v1144, %v1148
    %v1150 = vmul.f32 %v1145, %v1148
    %v1151 = vmul.f32 %v1146, %v1148
    %v1152 = vmul.f32 %v1147, %v1148
    %v1153 = vperm.slane %v87, 5
    %v1154 = vadd.f32 %v1149, %v1153
    %v1155 = vadd.f32 %v1150, %v1153
    %v1156 = vadd.f32 %v1151, %v1153
    %v1157 = vadd.f32 %v1152, %v1153
    %1158 = vst.msk [vmem:[#allocation2] sm:$0xff] %vm117, %v1154
    %1159 = vst.msk [vmem:[#allocation2 + $0x8] sm:$0xff] %vm117, %v1155
    %1160 = vst.msk [vmem:[#allocation2 + $0x10] sm:$0xff] %vm117, %v1156
    %1161 = vst.msk [vmem:[#allocation2 + $0x18] sm:$0xff] %vm117, %v1157
    // Predicated region
    $region14: #{transformer_block_pallas.1} parent=1 // pred_check
      _
    $region15: #{transformer_block_pallas.1} parent=1 // pred_check_branch
      %1163 = sbr.rel (0) target = $region17
    $region16: #{transformer_block_pallas.1} parent=1 // pred_region
      %1165 = vsyncadd [#allocation3], 0
      %s1166 = sshll.u32 [#allocation2], 4
      %s1167 = int_to_ptr.vmem [resolvable:$true] %s1166
      %s1168 = sshll.u32 %s3, 4
      %s1169 = int_to_ptr.hbm [resolvable:$true] %s1168
      %1174 = dma.vmem_to_hbm [thread:$0]  %s1167, 512, %s1169, [#allocation3], 128, 128, 8
    $region17: #{transformer_block_pallas.1} parent=1 // pred_fallthru
      _
    // Predicated region
    $region18: #{transformer_block_pallas.1} parent=1 // pred_check
      _
    $region19: #{transformer_block_pallas.1} parent=1 // pred_check_branch
      %1176 = sbr.rel (0) target = $region21
    $region20: #{transformer_block_pallas.1} parent=1 // pred_region
      %1178 = dma.done [#allocation3], 512
    $region21: #{transformer_block_pallas.1} parent=1 // pred_fallthru
      _
    %1179 = vsyncpa [#allocation3], 1

</llo_original>
